<compile_context>
chip_gen: v7x
topology: tpu7x:2x2x1
jax: 0.10.0
libtpu: 0.0.40
codegen_flags: <defaults>
</compile_context>

<pallas_src>
import jax
import jax.numpy as jnp
from jax.experimental import pallas as pl
from jax.experimental.pallas import tpu as pltpu

HIDDEN = 64


def _critic_kernel(x_ref, w1_ref, b1_ref, w2_ref, b2_ref, w3_ref, b3_ref, o_ref):
    # Layer 1: (TB, D) @ (D, 64) on the MXU, bf16 operands, f32 accumulate.
    x = x_ref[...].astype(jnp.bfloat16)
    h1 = jnp.dot(x, w1_ref[...], preferred_element_type=jnp.float32)
    h1 = jnp.maximum(h1 + b1_ref[...], 0.0)

    # Layer 2: (TB, 64) @ (64, 64), bf16 operands, f32 accumulate.
    h2 = jnp.dot(h1.astype(jnp.bfloat16), w2_ref[...],
                 preferred_element_type=jnp.float32)
    h2 = jnp.maximum(h2 + b2_ref[...], 0.0)

    # Layer 3 (64 -> 1): VPU multiply + lane reduction instead of an N=1 MXU
    # matmul (which would waste a full systolic pass for one useful column).
    # b3 is a scalar read from SMEM.
    v = jnp.sum(h2 * w3_ref[...], axis=-1, keepdims=True) + b3_ref[0]
    o_ref[...] = v.astype(o_ref.dtype)


def _pick_block_b(feat_bytes_per_row, max_block=2048, budget_bytes=24 << 20):
    """Largest power-of-two tile (>=128, multiple of 8/128) fitting the budget.

    Budget accounts for double-buffered input/output tiles plus f32
    intermediates, sized so the kernel stays well inside v7x's 64 MiB VMEM
    (and the 16/32 MiB default scoped limits on v5e/v6e)."""
    per_row = 2 * feat_bytes_per_row + 2 * 4 + 4 * HIDDEN * 4
    tb = max_block
    while tb > 128 and tb * per_row > budget_bytes:
        tb //= 2
    return tb


def critic_forward(state, params, *, block_b=None):
    """state: (B, input_dims); returns (B, 1) f32 values."""
    B, D = state.shape

    # Matmul weights in bf16 (MXU native); biases / final row stay f32.
    w1 = params["w1"].astype(jnp.bfloat16)
    w2 = params["w2"].astype(jnp.bfloat16)
    b1 = params["b1"].astype(jnp.float32)
    b2 = params["b2"].astype(jnp.float32)
    w3 = params["w3"].astype(jnp.float32)            # (1, 64) row, VPU dot
    b3 = params["b3"].reshape((1,)).astype(jnp.float32)  # SMEM scalar

    if block_b is None:
        block_b = _pick_block_b(D * state.dtype.itemsize)

    if B <= block_b:
        tb = B                     # single grid step, full-array blocks
        num_blocks = 1
        padded_b = B
    else:
        tb = block_b               # power of two >= 128 -> (8,128)-friendly
        num_blocks = pl.cdiv(B, tb)
        padded_b = num_blocks * tb

    x = state if padded_b == B else jnp.pad(state, ((0, padded_b - B), (0, 0)))

    weight_bytes = sum(int(a.size) * a.dtype.itemsize
                       for a in (w1, b1, w2, b2, w3))
    est = (2 * tb * D * state.dtype.itemsize   # double-buffered input tiles
           + 2 * tb * 4                        # double-buffered output tiles
           + 4 * tb * HIDDEN * 4               # f32 intermediates (generous)
           + weight_bytes)                     # resident weights
    vmem_limit = int(min(max(2 * est, 16 << 20), 40 << 20))

    out = pl.pallas_call(
        _critic_kernel,
        out_shape=jax.ShapeDtypeStruct((padded_b, 1), jnp.float32),
        grid=(num_blocks,),
        in_specs=[
            pl.BlockSpec((tb, D), lambda i: (i, 0)),       # state: streamed
            pl.BlockSpec(w1.shape, lambda i: (0, 0)),      # weights: resident
            pl.BlockSpec(b1.shape, lambda i: (0, 0)),
            pl.BlockSpec(w2.shape, lambda i: (0, 0)),
            pl.BlockSpec(b2.shape, lambda i: (0, 0)),
            pl.BlockSpec(w3.shape, lambda i: (0, 0)),
            pl.BlockSpec(memory_space=pltpu.MemorySpace.SMEM),  # b3 scalar
        ],
        out_specs=pl.BlockSpec((tb, 1), lambda i: (i, 0)),
        compiler_params=pltpu.CompilerParams(
            dimension_semantics=("parallel",),   # megacore on v7x, free elsewhere
            vmem_limit_bytes=vmem_limit,
        ),
    )(x, w1, b1, w2, b2, w3, b3)

    return out[:B]


def init_params(key, input_dims, hidden=HIDDEN):
    """PyTorch-style init: U(-1/sqrt(fan_in), 1/sqrt(fan_in)); (in, out) layout."""
    def linear(k, fan_in, fan_out):
        kw, kb = jax.random.split(k)
        bound = 1.0 / jnp.sqrt(fan_in)
        w = jax.random.uniform(kw, (fan_in, fan_out), jnp.float32, -bound, bound)
        b = jax.random.uniform(kb, (1, fan_out), jnp.float32, -bound, bound)
        return w, b

    k1, k2, k3 = jax.random.split(key, 3)
    w1, b1 = linear(k1, input_dims, hidden)
    w2, b2 = linear(k2, hidden, hidden)
    w3t, b3 = linear(k3, hidden, 1)
    return {
        "w1": w1, "b1": b1,
        "w2": w2, "b2": b2,
        "w3": w3t.T,            # keep as (1, 64) row (PyTorch layout) for VPU dot
        "b3": b3.reshape((1,)),
    }


def critic_reference(state, params):
    """Pure f32 math reference (matches PyTorch semantics)."""
    h1 = jnp.maximum(state @ params["w1"] + params["b1"], 0.0)
    h2 = jnp.maximum(h1 @ params["w2"] + params["b2"], 0.0)
    return jnp.sum(h2 * params["w3"], axis=-1, keepdims=True) + params["b3"]


def critic_reference_bf16(state, params):
    """Reference that mirrors the kernel's bf16-matmul / f32-accumulate arithmetic."""
    bf = jnp.bfloat16
    h1 = jnp.dot(state.astype(bf), params["w1"].astype(bf),
                 preferred_element_type=jnp.float32)
    h1 = jnp.maximum(h1 + params["b1"], 0.0)
    h2 = jnp.dot(h1.astype(bf), params["w2"].astype(bf),
                 preferred_element_type=jnp.float32)
    h2 = jnp.maximum(h2 + params["b2"], 0.0)
    return jnp.sum(h2 * params["w3"], axis=-1, keepdims=True) + params["b3"]


if __name__ == "__main__":
    key = jax.random.PRNGKey(0)
    k_params, k_small, k_big = jax.random.split(key, 3)

    input_dims = 32
    params = init_params(k_params, input_dims)

    # Small batch (single grid step, full-array blocks) — module-sized sanity check.
    state_small = jax.random.normal(k_small, (8, input_dims), jnp.float32)
    v_small = jax.block_until_ready(critic_forward(state_small, params))
    assert v_small.shape == (8, 1)
    assert jnp.allclose(v_small, critic_reference_bf16(state_small, params),
                        atol=1e-3, rtol=1e-3)
    assert jnp.allclose(v_small, critic_reference(state_small, params),
                        atol=5e-2, rtol=5e-2)

    # Tiled path: non-multiple batch exercises padding, a multi-step parallel
    # grid, pipelined state streaming and VMEM-resident weights.
    state_big = jax.random.normal(k_big, (1030, input_dims), jnp.float32)
    v_big = jax.block_until_ready(critic_forward(state_big, params, block_b=256))
    assert v_big.shape == (1030, 1)
    assert jnp.allclose(v_big, critic_reference_bf16(state_big, params),
                        atol=1e-3, rtol=1e-3)
    assert jnp.allclose(v_big, critic_reference(state_big, params),
                        atol=5e-2, rtol=5e-2)

    print("KERNEL_OK")
</pallas_src>

<mosaic_0001>
module attributes {stable_mosaic.version = 11 : i64} {
  func.func @_critic_kernel(%arg0: i32, %arg1: memref<8x32xf32, #tpu.memory_space<vmem>>, %arg2: memref<32x64xbf16, #tpu.memory_space<vmem>>, %arg3: memref<1x64xf32, #tpu.memory_space<vmem>>, %arg4: memref<64x64xbf16, #tpu.memory_space<vmem>>, %arg5: memref<1x64xf32, #tpu.memory_space<vmem>>, %arg6: memref<1x64xf32, #tpu.memory_space<vmem>>, %arg7: memref<1xf32, #tpu.memory_space<smem>>, %arg8: memref<8x1xf32, #tpu.memory_space<vmem>>) attributes {dimension_semantics = [#tpu.dimension_semantics<parallel>], iteration_bounds = array<i64: 1>, scalar_prefetch = 0 : i64, scratch_operands = 0 : i64, tpu.core_type = #tpu.core_type<tc>, window_params = [{transform_indices = @transform_0, window_bounds = array<i64: 8, 32>}, {pipeline_mode = #tpu.pipeline_mode<synchronous>, transform_indices = @transform_1, window_bounds = array<i64: 32, 64>}, {pipeline_mode = #tpu.pipeline_mode<synchronous>, transform_indices = @transform_2, window_bounds = array<i64: 1, 64>}, {pipeline_mode = #tpu.pipeline_mode<synchronous>, transform_indices = @transform_3, window_bounds = array<i64: 64, 64>}, {pipeline_mode = #tpu.pipeline_mode<synchronous>, transform_indices = @transform_4, window_bounds = array<i64: 1, 64>}, {pipeline_mode = #tpu.pipeline_mode<synchronous>, transform_indices = @transform_5, window_bounds = array<i64: 1, 64>}, {transform_indices = @transform_6, window_bounds = array<i64: 1>}, {transform_indices = @transform_7, window_bounds = array<i64: 8, 1>}]} {
    %c0 = arith.constant 0 : index
    %c0_0 = arith.constant 0 : index
    %0 = vector.load %arg1[%c0, %c0_0] : memref<8x32xf32, #tpu.memory_space<vmem>>, vector<8x32xf32>
    %1 = arith.truncf %0 : vector<8x32xf32> to vector<8x32xbf16>
    %c0_1 = arith.constant 0 : index
    %c0_2 = arith.constant 0 : index
    %2 = vector.load %arg2[%c0_1, %c0_2] : memref<32x64xbf16, #tpu.memory_space<vmem>>, vector<32x64xbf16>
    %cst = arith.constant dense<0.000000e+00> : vector<8x64xf32>
    %3 = tpu.matmul %1, %2, %cst {dimension_numbers = #tpu.dot_dimension_numbers<[1], [0], [0], [1], [0, 0, 1, 1], [], []>} : vector<8x32xbf16>, vector<32x64xbf16>, vector<8x64xf32> -> vector<8x64xf32>
    %c0_3 = arith.constant 0 : index
    %c0_4 = arith.constant 0 : index
    %4 = vector.load %arg3[%c0_3, %c0_4] : memref<1x64xf32, #tpu.memory_space<vmem>>, vector<1x64xf32>
    %5 = vector.broadcast %4 : vector<1x64xf32> to vector<8x64xf32>
    %6 = arith.addf %3, %5 : vector<8x64xf32>
    %cst_5 = arith.constant 0.000000e+00 : f32
    %7 = vector.broadcast %cst_5 : f32 to vector<8x64xf32>
    %8 = arith.maximumf %6, %7 : vector<8x64xf32>
    %9 = arith.truncf %8 : vector<8x64xf32> to vector<8x64xbf16>
    %c0_6 = arith.constant 0 : index
    %c0_7 = arith.constant 0 : index
    %10 = vector.load %arg4[%c0_6, %c0_7] : memref<64x64xbf16, #tpu.memory_space<vmem>>, vector<64x64xbf16>
    %cst_8 = arith.constant dense<0.000000e+00> : vector<8x64xf32>
    %11 = tpu.matmul %9, %10, %cst_8 {dimension_numbers = #tpu.dot_dimension_numbers<[1], [0], [0], [1], [0, 0, 1, 1], [], []>} : vector<8x64xbf16>, vector<64x64xbf16>, vector<8x64xf32> -> vector<8x64xf32>
    %c0_9 = arith.constant 0 : index
    %c0_10 = arith.constant 0 : index
    %12 = vector.load %arg5[%c0_9, %c0_10] : memref<1x64xf32, #tpu.memory_space<vmem>>, vector<1x64xf32>
    %13 = vector.broadcast %12 : vector<1x64xf32> to vector<8x64xf32>
    %14 = arith.addf %11, %13 : vector<8x64xf32>
    %cst_11 = arith.constant 0.000000e+00 : f32
    %15 = vector.broadcast %cst_11 : f32 to vector<8x64xf32>
    %16 = arith.maximumf %14, %15 : vector<8x64xf32>
    %c0_12 = arith.constant 0 : index
    %c0_13 = arith.constant 0 : index
    %17 = vector.load %arg6[%c0_12, %c0_13] : memref<1x64xf32, #tpu.memory_space<vmem>>, vector<1x64xf32>
    %18 = vector.broadcast %17 : vector<1x64xf32> to vector<8x64xf32>
    %19 = arith.mulf %16, %18 : vector<8x64xf32>
    %cst_14 = arith.constant dense<0.000000e+00> : vector<8xf32>
    %20 = vector.multi_reduction <add>, %19, %cst_14 [1] : vector<8x64xf32> to vector<8xf32>
    %21 = vector.shape_cast %20 : vector<8xf32> to vector<8x1xf32>
    %c0_15 = arith.constant 0 : index
    %22 = memref.load %arg7[%c0_15] : memref<1xf32, #tpu.memory_space<smem>>
    %23 = vector.broadcast %22 : f32 to vector<8x1xf32>
    %24 = arith.addf %21, %23 : vector<8x1xf32>
    %c0_16 = arith.constant 0 : index
    %c0_17 = arith.constant 0 : index
    %25 = vector.load %arg8[%c0_16, %c0_17] : memref<8x1xf32, #tpu.memory_space<vmem>>, vector<8x1xf32>
    tpu.vector_store %arg8[%c0_16, %c0_17], %24 {strides = array<i32>} : memref<8x1xf32, #tpu.memory_space<vmem>>, vector<8x1xf32>,
    return
  }
  func.func @transform_0(%arg0: i32) -> (i32, i32) {
    %c0_i32 = arith.constant 0 : i32
    %c0_i32_0 = arith.constant 0 : i32
    return %arg0, %c0_i32 : i32, i32
  }
  func.func @transform_1(%arg0: i32) -> (i32, i32) {
    %c0_i32 = arith.constant 0 : i32
    %c0_i32_0 = arith.constant 0 : i32
    %c0_i32_1 = arith.constant 0 : i32
    return %c0_i32, %c0_i32_0 : i32, i32
  }
  func.func @transform_2(%arg0: i32) -> (i32, i32) {
    %c0_i32 = arith.constant 0 : i32
    %c0_i32_0 = arith.constant 0 : i32
    %c0_i32_1 = arith.constant 0 : i32
    return %c0_i32, %c0_i32_0 : i32, i32
  }
  func.func @transform_3(%arg0: i32) -> (i32, i32) {
    %c0_i32 = arith.constant 0 : i32
    %c0_i32_0 = arith.constant 0 : i32
    %c0_i32_1 = arith.constant 0 : i32
    return %c0_i32, %c0_i32_0 : i32, i32
  }
  func.func @transform_4(%arg0: i32) -> (i32, i32) {
    %c0_i32 = arith.constant 0 : i32
    %c0_i32_0 = arith.constant 0 : i32
    %c0_i32_1 = arith.constant 0 : i32
    return %c0_i32, %c0_i32_0 : i32, i32
  }
  func.func @transform_5(%arg0: i32) -> (i32, i32) {
    %c0_i32 = arith.constant 0 : i32
    %c0_i32_0 = arith.constant 0 : i32
    %c0_i32_1 = arith.constant 0 : i32
    return %c0_i32, %c0_i32_0 : i32, i32
  }
  func.func @transform_6(%arg0: i32) -> i32 {
    %c0_i32 = arith.constant 0 : i32
    %c0_i32_0 = arith.constant 0 : i32
    return %c0_i32 : i32
  }
  func.func @transform_7(%arg0: i32) -> (i32, i32) {
    %c0_i32 = arith.constant 0 : i32
    %c0_i32_0 = arith.constant 0 : i32
    return %arg0, %c0_i32 : i32, i32
  }
}

</mosaic_0001>

<llo_original>
// kernel: tpu_custom_call.1
$region0: #{tpu_custom_call.1}
  #allocation0 [shape = 'u32[]', space=smem, size = 0x4, offset = 0x4, fixed_abs, tag = 'smem constant byte address 0x4 - core index']
  #allocation1 [shape = 'u32[144,128]{1,0:T(1,128)}', space=vmem, size = 0x12000, scoped, tag = 'internal scratch']
  #allocation2 [shape = 'f32[1]{0:T(128)S(6)}', space=smem, size = 0x200, scoped, tag = 'scoped memory for tpu_custom_call.1']
  %s0 = inlined_call_operand.hbm [shape: f32[8,32], index: 0, kind: input, shape index: {}]
  %s1 = inlined_call_operand.hbm [shape: bf16[32,64], index: 1, kind: input, shape index: {}]
  %s2 = inlined_call_operand.vmem [shape: f32[1,64], index: 2, kind: input, shape index: {}]
  %s3 = inlined_call_operand.hbm [shape: bf16[64,64], index: 3, kind: input, shape index: {}]
  %s4 = inlined_call_operand.vmem [shape: f32[1,64], index: 4, kind: input, shape index: {}]
  %s5 = inlined_call_operand.vmem [shape: f32[1,64], index: 5, kind: input, shape index: {}]
  %s6 = inlined_call_operand.<no memory space> [shape: f32[1], index: 6, kind: input, shape index: {}]
  %s7 = inlined_call_operand.vmem [shape: f32[8,1], index: 7, kind: output, shape index: {}]
  %s8 = sld [smem:[#allocation0]]
  $region50: #{tpu_custom_call.1} parent=0
    _
  %s10 = ssub.s32 1, %s8
  %s11 = scalar_select 0, %s10, %s8
  %12 = sst [smem:[#allocation2]] %s6
  $region1: #{tpu_custom_call.1} parent=0
    #allocation3 [shape = 'u8[4096]{0}', space=vmem, size = 0x1000, scoped, tag = 'input window, operand 0, single buffered']
    #allocation4 [shape = 's32[1]{0}', space=sflag, size = 0x4, scoped, tag = 'scoped memory for tpu_custom_call.1']
    #allocation5 [shape = 'u8[8192]{0}', space=vmem, size = 0x2000, scoped, tag = 'input window, operand 1, single buffered']
    #allocation6 [shape = 's32[1]{0}', space=sflag, size = 0x4, scoped, tag = 'scoped memory for tpu_custom_call.1']
    #allocation7 [shape = 'u8[16384]{0}', space=vmem, size = 0x4000, scoped, tag = 'input window, operand 3, single buffered']
    %13 = vsyncpa [#allocation4], 0
    %14 = vsyncpa [#allocation6], 0
    // Predicated region
    $region2: #{tpu_custom_call.1} parent=1 // pred_check
      _
    $region3: #{tpu_custom_call.1} parent=1 // pred_check_branch
      %16 = sbr.rel (0) target = $region5
    $region4: #{tpu_custom_call.1} parent=1 // pred_region
      %s18 = ssub.s32 128, 128
      %19 = vsyncadd [#allocation4], %s18
      %s21 = sshll.u32 [#allocation3], 4
      %s22 = int_to_ptr.vmem [resolvable:$true] %s21
      %24 = dma.hbm_to_vmem [thread:$0]  %s0, 128, %s22, [#allocation4]
    $region5: #{tpu_custom_call.1} parent=1 // pred_fallthru
      _
    // Predicated region
    $region6: #{tpu_custom_call.1} parent=1 // pred_check
      _
    $region7: #{tpu_custom_call.1} parent=1 // pred_check_branch
      %26 = sbr.rel (0) target = $region9
    $region8: #{tpu_custom_call.1} parent=1 // pred_region
      %s28 = ssub.s32 256, 256
      %29 = vsyncadd [#allocation6], %s28
      %s30 = sshll.u32 [#allocation5], 4
      %s31 = int_to_ptr.vmem [resolvable:$true] %s30
      %36 = dma.hbm_to_vmem [thread:$0]  %s1, 256, %s31, [#allocation6], 64, 64, 4
    $region9: #{tpu_custom_call.1} parent=1 // pred_fallthru
      _
    // Predicated region
    $region10: #{tpu_custom_call.1} parent=1 // pred_check
      _
    $region11: #{tpu_custom_call.1} parent=1 // pred_check_branch
      %38 = sbr.rel (0) target = $region13
    $region12: #{tpu_custom_call.1} parent=1 // pred_region
      _
    $region13: #{tpu_custom_call.1} parent=1 // pred_fallthru
      _
    // Predicated region
    $region14: #{tpu_custom_call.1} parent=1 // pred_check
      _
    $region15: #{tpu_custom_call.1} parent=1 // pred_check_branch
      %40 = sbr.rel (0) target = $region17
    $region16: #{tpu_custom_call.1} parent=1 // pred_region
      %s42 = ssub.s32 512, 512
      %43 = vsyncadd [#allocation6], %s42
      %s44 = sshll.u32 [#allocation7], 4
      %s45 = int_to_ptr.vmem [resolvable:$true] %s44
      %50 = dma.hbm_to_vmem [thread:$0]  %s3, 512, %s45, [#allocation6], 64, 64, 4
    $region17: #{tpu_custom_call.1} parent=1 // pred_fallthru
      _
    // Predicated region
    $region18: #{tpu_custom_call.1} parent=1 // pred_check
      _
    $region19: #{tpu_custom_call.1} parent=1 // pred_check_branch
      %52 = sbr.rel (0) target = $region21
    $region20: #{tpu_custom_call.1} parent=1 // pred_region
      _
    $region21: #{tpu_custom_call.1} parent=1 // pred_fallthru
      _
    // Predicated region
    $region22: #{tpu_custom_call.1} parent=1 // pred_check
      _
    $region23: #{tpu_custom_call.1} parent=1 // pred_check_branch
      %54 = sbr.rel (0) target = $region25
    $region24: #{tpu_custom_call.1} parent=1 // pred_region
      _
    $region25: #{tpu_custom_call.1} parent=1 // pred_fallthru
      _
    // Predicated region
    $region26: #{tpu_custom_call.1} parent=1 // pred_check
      _
    $region27: #{tpu_custom_call.1} parent=1 // pred_check_branch
      %56 = sbr.rel (0) target = $region29
    $region28: #{tpu_custom_call.1} parent=1 // pred_region
      _
    $region29: #{tpu_custom_call.1} parent=1 // pred_fallthru
      _
    // Predicated region
    $region30: #{tpu_custom_call.1} parent=1 // pred_check
      _
    $region31: #{tpu_custom_call.1} parent=1 // pred_check_branch
      %58 = sbr.rel (0) target = $region33
    $region32: #{tpu_custom_call.1} parent=1 // pred_region
      %59 = dma.done [#allocation4], 128
    $region33: #{tpu_custom_call.1} parent=1 // pred_fallthru
      _
    // Predicated region
    $region34: #{tpu_custom_call.1} parent=1 // pred_check
      _
    $region35: #{tpu_custom_call.1} parent=1 // pred_check_branch
      %61 = sbr.rel (0) target = $region37
    $region36: #{tpu_custom_call.1} parent=1 // pred_region
      %62 = dma.done [#allocation6], 256
    $region37: #{tpu_custom_call.1} parent=1 // pred_fallthru
      _
    // Predicated region
    $region38: #{tpu_custom_call.1} parent=1 // pred_check
      _
    $region39: #{tpu_custom_call.1} parent=1 // pred_check_branch
      %64 = sbr.rel (0) target = $region41
    $region40: #{tpu_custom_call.1} parent=1 // pred_region
      %65 = dma.done [#allocation6], 512
    $region41: #{tpu_custom_call.1} parent=1 // pred_fallthru
      _
    %v67 = vld [vmem:[#allocation3] sm:$0xff]
    %v68 = vpack.c.bf16 %v67, %v67
    %v69 = vld [vmem:[#allocation5] sm:$0xf]
    %v70 = vld [vmem:[#allocation5 + $0x4] sm:$0xf]
    %v71 = vld [vmem:[#allocation5 + $0x8] sm:$0xf]
    %v72 = vld [vmem:[#allocation5 + $0xc] sm:$0xf]
    %v73 = vld [vmem:[%s2] sm:$0x1]
    %v75 = vlaneseq
    %v76 = vshrl.u32 %v75, 7
    %v77 = vsub.s32 0, %v76
    %v78 = vrot.slane %v73, %v77
    %v84 = vunpack.c.l.b16 %v69
    %v85 = vunpack.c.l.b16 %v70
    %v86 = vunpack.c.l.b16 %v71
    %v87 = vunpack.c.l.b16 %v72
    %v88 = vpack.c.b16 %v85, %v84
    %v89 = vpack.c.b16 %v87, %v86
    %vm92 = vcmask 261120
    %v94 = vsel %vm92, %v68, 0
    %96 = vmatprep.subr.bf16.mxu0 0
    %97 = vmatpush1.bf16.msra.mxu0 %v88
    %98 = vmatprep.subr.bf16.mxu0 0
    %99 = vmatpush1.bf16.msra.mxu0 %v89
    %100 = vmatprep.subr.bf16.mxu0 0
    %101 = vmatpush1.bf16.msra.mxu0 0
    %102 = vmatprep.subr.bf16.mxu0 0
    %103 = vmatpush1.bf16.msra.mxu0 0
    %104 = vmatprep.subr.bf16.mxu0 0
    %105 = vmatpush1.bf16.msra.mxu0 0
    %106 = vmatprep.subr.bf16.mxu0 0
    %107 = vmatpush1.bf16.msra.mxu0 0
    %108 = vmatprep.subr.bf16.mxu0 0
    %109 = vmatpush1.bf16.msra.mxu0 0
    %110 = vmatprep.subr.bf16.mxu0 0
    %111 = vmatpush1.bf16.msra.mxu0 0
    %112 = vmatprep.subr.bf16.mxu0 0
    %113 = vmatpush1.bf16.msra.mxu0 0
    %114 = vmatprep.subr.bf16.mxu0 0
    %115 = vmatpush1.bf16.msra.mxu0 0
    %116 = vmatprep.subr.bf16.mxu0 0
    %117 = vmatpush1.bf16.msra.mxu0 0
    %118 = vmatprep.subr.bf16.mxu0 0
    %119 = vmatpush1.bf16.msra.mxu0 0
    %120 = vmatprep.subr.bf16.mxu0 0
    %121 = vmatpush1.bf16.msra.mxu0 0
    %122 = vmatprep.subr.bf16.mxu0 0
    %123 = vmatpush1.bf16.msra.mxu0 0
    %124 = vmatprep.subr.bf16.mxu0 0
    %125 = vmatpush1.bf16.msra.mxu0 0
    %126 = vmatprep.subr.bf16.mxu0 0
    %127 = vmatpush1.bf16.msra.mxu0 0
    %128 = vmatprep.mubr.bf16.mxu0 0
    %129 = vmatmul.mubr.bf16.gmra.mrb[0].mxu0 %v94
    %v130 = vpop.f32.mrb[0].mxu0
    %v131 = vadd.f32 %v78, %v130
    %v132 = vpop.f32.mrb[0].mxu0
    %v133 = vpop.f32.mrb[0].mxu0
    %v134 = vpop.f32.mrb[0].mxu0
    %135 = vdwg.mxu0
    %v136 = vmax.f32 %v131, 0.0
    %v137 = vpack.c.bf16 %v136, %v136
    %v138 = vld [vmem:[#allocation7] sm:$0xf]
    %v139 = vld [vmem:[#allocation7 + $0x4] sm:$0xf]
    %v140 = vld [vmem:[#allocation7 + $0x8] sm:$0xf]
    %v141 = vld [vmem:[#allocation7 + $0xc] sm:$0xf]
    %v142 = vld [vmem:[#allocation7 + $0x10] sm:$0xf]
    %v143 = vld [vmem:[#allocation7 + $0x14] sm:$0xf]
    %v144 = vld [vmem:[#allocation7 + $0x18] sm:$0xf]
    %v145 = vld [vmem:[#allocation7 + $0x1c] sm:$0xf]
    %v146 = vld [vmem:[%s4] sm:$0x1]
    %v148 = vlaneseq
    %v149 = vshrl.u32 %v148, 7
    %v150 = vsub.s32 0, %v149
    %v151 = vrot.slane %v146, %v150
    %v161 = vunpack.c.l.b16 %v138
    %v162 = vunpack.c.l.b16 %v139
    %v163 = vunpack.c.l.b16 %v140
    %v164 = vunpack.c.l.b16 %v141
    %v165 = vunpack.c.l.b16 %v142
    %v166 = vunpack.c.l.b16 %v143
    %v167 = vunpack.c.l.b16 %v144
    %v168 = vunpack.c.l.b16 %v145
    %v169 = vpack.c.b16 %v162, %v161
    %v170 = vpack.c.b16 %v164, %v163
    %v171 = vpack.c.b16 %v166, %v165
    %v172 = vpack.c.b16 %v168, %v167
    %vm177 = vcmask 523264
    %v179 = vsel %vm177, %v137, 0
    %181 = vmatprep.subr.bf16.mxu0 0
    %182 = vmatpush1.bf16.msra.mxu0 %v169
    %183 = vmatprep.subr.bf16.mxu0 0
    %184 = vmatpush1.bf16.msra.mxu0 %v170
    %185 = vmatprep.subr.bf16.mxu0 0
    %186 = vmatpush1.bf16.msra.mxu0 %v171
    %187 = vmatprep.subr.bf16.mxu0 0
    %188 = vmatpush1.bf16.msra.mxu0 %v172
    %189 = vmatprep.subr.bf16.mxu0 0
    %190 = vmatpush1.bf16.msra.mxu0 0
    %191 = vmatprep.subr.bf16.mxu0 0
    %192 = vmatpush1.bf16.msra.mxu0 0
    %193 = vmatprep.subr.bf16.mxu0 0
    %194 = vmatpush1.bf16.msra.mxu0 0
    %195 = vmatprep.subr.bf16.mxu0 0
    %196 = vmatpush1.bf16.msra.mxu0 0
    %197 = vmatprep.subr.bf16.mxu0 0
    %198 = vmatpush1.bf16.msra.mxu0 0
    %199 = vmatprep.subr.bf16.mxu0 0
    %200 = vmatpush1.bf16.msra.mxu0 0
    %201 = vmatprep.subr.bf16.mxu0 0
    %202 = vmatpush1.bf16.msra.mxu0 0
    %203 = vmatprep.subr.bf16.mxu0 0
    %204 = vmatpush1.bf16.msra.mxu0 0
    %205 = vmatprep.subr.bf16.mxu0 0
    %206 = vmatpush1.bf16.msra.mxu0 0
    %207 = vmatprep.subr.bf16.mxu0 0
    %208 = vmatpush1.bf16.msra.mxu0 0
    %209 = vmatprep.subr.bf16.mxu0 0
    %210 = vmatpush1.bf16.msra.mxu0 0
    %211 = vmatprep.subr.bf16.mxu0 0
    %212 = vmatpush1.bf16.msra.mxu0 0
    %213 = vmatprep.mubr.bf16.mxu0 0
    %214 = vmatmul.mubr.bf16.gmra.mrb[0].mxu0 %v179
    %v215 = vpop.f32.mrb[0].mxu0
    %v216 = vadd.f32 %v151, %v215
    %v217 = vpop.f32.mrb[0].mxu0
    %v218 = vpop.f32.mrb[0].mxu0
    %v219 = vpop.f32.mrb[0].mxu0
    %220 = vdwg.mxu0
    %v221 = vmax.f32 %v216, 0.0
    %v222 = vld [vmem:[%s5] sm:$0x1]
    %v224 = vlaneseq
    %v225 = vshrl.u32 %v224, 7
    %v226 = vsub.s32 0, %v225
    %v227 = vrot.slane %v222, %v226
    %v229 = vmul.f32 %v221, %v227
    %v230 = vsel %vm177, %v229, 0.0
    %231 = vadd.xlane.f32.xlu0 %v230
    %v232 = vpop.xlane.xlu0 %231
    %s233 = sld [smem:[#allocation2]]
    %v234 = vstv %s233
    %v235 = vadd.f32 %v232, %v234
    %vm236 = vcmask 7168
    %237 = vst.msk [vmem:[%s7] sm:$0xff] %vm236, %v235
    // Predicated region
    $region42: #{tpu_custom_call.1} parent=1 // pred_check
      _
    $region43: #{tpu_custom_call.1} parent=1 // pred_check_branch
      %239 = sbr.rel (0) target = $region45
    $region44: #{tpu_custom_call.1} parent=1 // pred_region
      _
    $region45: #{tpu_custom_call.1} parent=1 // pred_fallthru
      _
    // Predicated region
    $region46: #{tpu_custom_call.1} parent=1 // pred_check
      _
    $region47: #{tpu_custom_call.1} parent=1 // pred_check_branch
      %241 = sbr.rel (0) target = $region49
    $region48: #{tpu_custom_call.1} parent=1 // pred_region
      _
    $region49: #{tpu_custom_call.1} parent=1 // pred_fallthru
      _
    %242 = vsyncpa [#allocation4], 1
    %243 = vsyncpa [#allocation6], 1

</llo_original>
